<compile_context>
chip_gen: v6e
topology: v6e:2x2x1
jax: 0.10.0
libtpu: 0.0.40
codegen_flags: <defaults>
</compile_context>

<pallas_src>
import functools

import numpy as np
import jax
import jax.numpy as jnp
from jax import lax
from jax.experimental import pallas as pl
from jax.experimental.pallas import tpu as pltpu

# Tap order matches the weight reshape in the wrapper: t = ky*3 + kx,
# (dy, dx) = (ky - 1, kx - 1).
_TAPS = tuple((ky - 1, kx - 1) for ky in range(3) for kx in range(3))

# Max images per grid step.  Per-image working set is tiny (<100 KiB at these
# shapes), far below the VMEM budget on every TPU generation.
_NB_CAP = 8


def _double_conv_kernel(x_ref, w1_ref, w2_ref, mask_ref, o_ref, *, H, W, nb):
    """Processes `nb` images per grid step.

    x_ref:    (nb, Cin, H*W)   inputs (channels x flattened spatial)
    w1_ref:   (9*Cmid, Cin)    conv1 weights, rows ordered (tap, out_channel)
    w2_ref:   (9*Cout, Cmid)   conv2 weights, same ordering
    mask_ref: (9, Cmax, H*W)   per-tap boundary masks, pre-broadcast over
                               sublanes (1.0 inside image, 0.0 at the halo)
    o_ref:    (nb, Cout, H*W)  outputs (lane-dense: H*W is a multiple of 128)
    """
    HW = H * W
    eps = 1e-5
    neg_slope = 0.2
    cmid = w1_ref.shape[0] // 9
    cout = w2_ref.shape[0] // 9

    def tap_shift(v, t, c_out):
        # v holds the tap-t contribution at source pixel (y+dy, x+dx); roll it
        # back to destination pixel (y, x) and zero what fell off the image
        # (== the conv's zero padding).  Roll is XLU work; the mask is a plain
        # full-vreg VPU multiply (masks pre-broadcast in the wrapper).
        dy, dx = _TAPS[t]
        s = dy * W + dx
        if s == 0:  # centre tap: no shift, no mask needed.
            return v
        v = pltpu.roll(v, shift=(-s) % HW, axis=1)
        return v * mask_ref[t, 0:c_out, :]

    def conv3x3(x, w_ref, c_out):
        # All 9 taps fused into a single MXU matmul: (9*c_out, c_in) @ (c_in, HW).
        # TODO(synk): cast operands to bf16 on v6e/v7x when tolerances allow.
        # TODO(synk): switch to im2col-on-input if c_out grows beyond ~16 to
        # cap the live matmul result at (c_out, HW).
        y = jnp.dot(w_ref[...], x, preferred_element_type=jnp.float32)
        vals = [tap_shift(y[t * c_out:(t + 1) * c_out, :], t, c_out)
                for t in range(9)]
        # Balanced-tree accumulation: ~log2(9)-deep instead of a 9-long serial
        # add chain; lets VPU adds overlap XLU roll latency.
        while len(vals) > 1:
            nxt = [a + b for a, b in zip(vals[0::2], vals[1::2])]
            if len(vals) % 2:
                nxt.append(vals[-1])
            vals = nxt
        return vals[0]

    def inorm_lrelu(h):
        # InstanceNorm2d (affine=False, biased var, eps=1e-5) + LeakyReLU(0.2).
        # var = E[x^2] - mean^2: the two cross-lane reductions are independent
        # and can issue back-to-back (shorter XLU dependency chain).
        mean = jnp.mean(h, axis=1, keepdims=True)
        mean_sq = jnp.mean(h * h, axis=1, keepdims=True)
        var = jnp.maximum(mean_sq - mean * mean, 0.0)
        hn = (h - mean) * lax.rsqrt(var + eps)
        return jnp.maximum(hn, neg_slope * hn)

    def process_image(x_i):
        h1 = inorm_lrelu(conv3x3(x_i, w1_ref, cmid))
        # TODO(synk): Dropout2d is identity at inference; training-mode
        # per-sample channel dropout is not implemented here.
        return inorm_lrelu(conv3x3(h1, w2_ref, cout))

    if nb <= 2:
        # Static unroll: lets the scheduler overlap the independent images.
        for i in range(nb):
            o_ref[i] = process_image(x_ref[i])
    else:
        # fori_loop bounds live ranges / vreg pressure for larger nb.
        def body(i, carry):
            o_ref[i] = process_image(x_ref[i])
            return carry
        lax.fori_loop(0, nb, body, 0)


def _tap_boundary_masks(H, W, C):
    """(9, C, H*W) float32: 1.0 where (y+dy, x+dx) is inside the image."""
    ys, xs = np.meshgrid(np.arange(H), np.arange(W), indexing="ij")
    masks = []
    for dy, dx in _TAPS:
        valid = ((ys + dy >= 0) & (ys + dy < H) &
                 (xs + dx >= 0) & (xs + dx < W)).reshape(1, H * W)
        masks.append(np.broadcast_to(valid, (C, H * W)))
    return jnp.asarray(np.stack(masks, axis=0), dtype=jnp.float32)


def _conv_weight_to_tap_matrix(w_oihw):
    # PyTorch (Cout, Cin, 3, 3) -> (9*Cout, Cin), rows ordered (ky, kx, cout)
    # so that row index = t*Cout + cout with t = ky*3 + kx (matches _TAPS).
    cout, cin = w_oihw.shape[0], w_oihw.shape[1]
    return jnp.transpose(w_oihw, (2, 3, 0, 1)).reshape(9 * cout, cin)


def double_conv_block(x_nchw, w1_oihw, w2_oihw):
    """Forward pass of DoubleConvBlock (eval mode; Dropout2d == identity).

    x_nchw:  (N, Cin, H, W)
    w1_oihw: (Cmid, Cin, 3, 3)   PyTorch Conv2d weight layout, bias=False
    w2_oihw: (Cout, Cmid, 3, 3)
    returns: (N, Cout, H, W)
    """
    N, Cin, H, W = x_nchw.shape
    Cmid = w1_oihw.shape[0]
    Cout = w2_oihw.shape[0]
    HW = H * W
    Cmax = max(Cmid, Cout)

    # Grid sizing: pack up to _NB_CAP images per step (amortizes per-step
    # pipeline overhead), but keep >= 2 grid steps whenever N >= 2 so the
    # "parallel" axis shards across both TensorCores on v7x.
    num_steps = max(min(N, 2), pl.cdiv(N, _NB_CAP))
    nb = pl.cdiv(N, num_steps)
    n_pad = num_steps * nb

    # NCHW -> (N, C, H*W) is a free reshape; no channel pad (full-extent
    # blocks make sublane padding implicit) and no spatial pad/transpose.
    x_flat = x_nchw.reshape(N, Cin, HW).astype(jnp.float32)
    if n_pad != N:
        # Zero images normalize to zeros (var=0 -> rsqrt(eps) * 0); sliced off.
        x_flat = jnp.pad(x_flat, ((0, n_pad - N), (0, 0), (0, 0)))

    w1_mat = _conv_weight_to_tap_matrix(w1_oihw.astype(jnp.float32))
    w2_mat = _conv_weight_to_tap_matrix(w2_oihw.astype(jnp.float32))
    masks = _tap_boundary_masks(H, W, Cmax)

    kernel = functools.partial(_double_conv_kernel, H=H, W=W, nb=nb)
    out_flat = pl.pallas_call(
        kernel,
        out_shape=jax.ShapeDtypeStruct((n_pad, Cout, HW), jnp.float32),
        grid=(num_steps,),
        in_specs=[
            pl.BlockSpec((nb, Cin, HW), lambda n: (n, 0, 0)),
            pl.BlockSpec((9 * Cmid, Cin), lambda n: (0, 0)),
            pl.BlockSpec((9 * Cout, Cmid), lambda n: (0, 0)),
            pl.BlockSpec((9, Cmax, HW), lambda n: (0, 0, 0)),
        ],
        out_specs=pl.BlockSpec((nb, Cout, HW), lambda n: (n, 0, 0)),
        compiler_params=pltpu.CompilerParams(
            dimension_semantics=("parallel",),
            # Explicit budget; per-step working set here is well under 1 MiB.
            # TODO(synk): add an H-split (halo rows) tiling path for large
            # C / H*W shapes that would exceed v7x's 64 MiB VMEM.
            vmem_limit_bytes=32 * 1024 * 1024),
    )(x_flat, w1_mat, w2_mat, masks)

    if n_pad != N:
        out_flat = out_flat[:N]
    # (N, Cout, H*W) -> (N, Cout, H, W): free reshape, no transpose.
    return out_flat.reshape(N, Cout, H, W)


def _reference_forward(x_nchw, w1_oihw, w2_oihw):
    """Pure-JAX reference (eval mode: Dropout2d is identity)."""
    def conv(x, w):
        return lax.conv_general_dilated(
            x, w, window_strides=(1, 1), padding=((1, 1), (1, 1)),
            dimension_numbers=("NCHW", "OIHW", "NCHW"))

    def inorm(x):
        m = x.mean(axis=(2, 3), keepdims=True)
        v = ((x - m) ** 2).mean(axis=(2, 3), keepdims=True)
        return (x - m) / jnp.sqrt(v + 1e-5)

    def lrelu(x):
        return jnp.where(x >= 0, x, 0.2 * x)

    h = lrelu(inorm(conv(x_nchw, w1_oihw)))
    return lrelu(inorm(conv(h, w2_oihw)))


if __name__ == "__main__":
    # Shapes consistent with the module: in_ch=4, out_ch=8, 16x16 spatial.
    Cin, Cout, H, W = 4, 8, 16, 16
    drop_prob = 0.1  # Dropout2d has no effect at inference.

    key = jax.random.PRNGKey(0)
    k_w1, k_w2, k_x = jax.random.split(key, 3)
    w1 = 0.1 * jax.random.normal(k_w1, (Cout, Cin, 3, 3), dtype=jnp.float32)
    w2 = 0.1 * jax.random.normal(k_w2, (Cout, Cout, 3, 3), dtype=jnp.float32)

    fwd = jax.jit(double_conv_block)

    # N=2: spec-sized check (2 grid steps x 1 image, static inner path).
    # N=5: non-divisible batch (zero-pad path).
    # N=8: multiple images per grid step (fori_loop inner path).
    for n_batch in (2, 5, 8):
        kx = jax.random.fold_in(k_x, n_batch)
        x = jax.random.normal(kx, (n_batch, Cin, H, W), dtype=jnp.float32)
        out = jax.block_until_ready(fwd(x, w1, w2))
        ref = _reference_forward(x, w1, w2)
        assert out.shape == (n_batch, Cout, H, W), out.shape
        err = float(jnp.max(jnp.abs(out - ref)))
        assert jnp.allclose(out, ref, rtol=1e-4, atol=5e-4), (
            f"N={n_batch}: max abs err = {err}")
    print("KERNEL_OK")
</pallas_src>

<mosaic_0001>
module attributes {stable_mosaic.version = 11 : i64} {
  func.func @_double_conv_kernel(%arg0: i32, %arg1: memref<1x4x256xf32, #tpu.memory_space<vmem>>, %arg2: memref<72x4xf32, #tpu.memory_space<vmem>>, %arg3: memref<72x8xf32, #tpu.memory_space<vmem>>, %arg4: memref<9x8x256xf32, #tpu.memory_space<vmem>>, %arg5: memref<1x8x256xf32, #tpu.memory_space<vmem>>) attributes {dimension_semantics = [#tpu.dimension_semantics<parallel>], iteration_bounds = array<i64: 2>, scalar_prefetch = 0 : i64, scratch_operands = 0 : i64, tpu.core_type = #tpu.core_type<tc>, window_params = [{transform_indices = @transform_0, window_bounds = array<i64: 1, 4, 256>}, {pipeline_mode = #tpu.pipeline_mode<synchronous>, transform_indices = @transform_1, window_bounds = array<i64: 72, 4>}, {pipeline_mode = #tpu.pipeline_mode<synchronous>, transform_indices = @transform_2, window_bounds = array<i64: 72, 8>}, {pipeline_mode = #tpu.pipeline_mode<synchronous>, transform_indices = @transform_3, window_bounds = array<i64: 9, 8, 256>}, {transform_indices = @transform_4, window_bounds = array<i64: 1, 8, 256>}]} {
    %c0 = arith.constant 0 : index
    %c0_0 = arith.constant 0 : index
    %c0_1 = arith.constant 0 : index
    %0 = vector.load %arg1[%c0, %c0_0, %c0_1] : memref<1x4x256xf32, #tpu.memory_space<vmem>>, vector<1x4x256xf32>
    %1 = vector.shape_cast %0 : vector<1x4x256xf32> to vector<4x256xf32>
    %c0_2 = arith.constant 0 : index
    %c0_3 = arith.constant 0 : index
    %2 = vector.load %arg2[%c0_2, %c0_3] : memref<72x4xf32, #tpu.memory_space<vmem>>, vector<72x4xf32>
    %cst = arith.constant dense<0.000000e+00> : vector<72x256xf32>
    %3 = tpu.matmul %2, %1, %cst {dimension_numbers = #tpu.dot_dimension_numbers<[1], [0], [0], [1], [0, 0, 1, 1], [], []>} : vector<72x4xf32>, vector<4x256xf32>, vector<72x256xf32> -> vector<72x256xf32>
    %4 = vector.extract_strided_slice %3 {offsets = [0, 0], sizes = [8, 256], strides = [1, 1]} : vector<72x256xf32> to vector<8x256xf32>
    %c17_i32 = arith.constant 17 : i32
    %5 = tpu.dynamic_rotate %4 by %c17_i32 dim 1 : vector<8x256xf32>, i32 -> vector<8x256xf32>
    %c0_4 = arith.constant 0 : index
    %c0_5 = arith.constant 0 : index
    %c0_6 = arith.constant 0 : index
    %6 = vector.load %arg4[%c0_4, %c0_5, %c0_6] : memref<9x8x256xf32, #tpu.memory_space<vmem>>, vector<1x8x256xf32>
    %7 = vector.shape_cast %6 : vector<1x8x256xf32> to vector<8x256xf32>
    %8 = arith.mulf %5, %7 : vector<8x256xf32>
    %9 = vector.extract_strided_slice %3 {offsets = [8, 0], sizes = [8, 256], strides = [1, 1]} : vector<72x256xf32> to vector<8x256xf32>
    %c16_i32 = arith.constant 16 : i32
    %10 = tpu.dynamic_rotate %9 by %c16_i32 dim 1 : vector<8x256xf32>, i32 -> vector<8x256xf32>
    %c1 = arith.constant 1 : index
    %c0_7 = arith.constant 0 : index
    %c0_8 = arith.constant 0 : index
    %11 = vector.load %arg4[%c1, %c0_7, %c0_8] : memref<9x8x256xf32, #tpu.memory_space<vmem>>, vector<1x8x256xf32>
    %12 = vector.shape_cast %11 : vector<1x8x256xf32> to vector<8x256xf32>
    %13 = arith.mulf %10, %12 : vector<8x256xf32>
    %14 = vector.extract_strided_slice %3 {offsets = [16, 0], sizes = [8, 256], strides = [1, 1]} : vector<72x256xf32> to vector<8x256xf32>
    %c15_i32 = arith.constant 15 : i32
    %15 = tpu.dynamic_rotate %14 by %c15_i32 dim 1 : vector<8x256xf32>, i32 -> vector<8x256xf32>
    %c2 = arith.constant 2 : index
    %c0_9 = arith.constant 0 : index
    %c0_10 = arith.constant 0 : index
    %16 = vector.load %arg4[%c2, %c0_9, %c0_10] : memref<9x8x256xf32, #tpu.memory_space<vmem>>, vector<1x8x256xf32>
    %17 = vector.shape_cast %16 : vector<1x8x256xf32> to vector<8x256xf32>
    %18 = arith.mulf %15, %17 : vector<8x256xf32>
    %19 = vector.extract_strided_slice %3 {offsets = [24, 0], sizes = [8, 256], strides = [1, 1]} : vector<72x256xf32> to vector<8x256xf32>
    %c1_i32 = arith.constant 1 : i32
    %20 = tpu.dynamic_rotate %19 by %c1_i32 dim 1 : vector<8x256xf32>, i32 -> vector<8x256xf32>
    %c3 = arith.constant 3 : index
    %c0_11 = arith.constant 0 : index
    %c0_12 = arith.constant 0 : index
    %21 = vector.load %arg4[%c3, %c0_11, %c0_12] : memref<9x8x256xf32, #tpu.memory_space<vmem>>, vector<1x8x256xf32>
    %22 = vector.shape_cast %21 : vector<1x8x256xf32> to vector<8x256xf32>
    %23 = arith.mulf %20, %22 : vector<8x256xf32>
    %24 = vector.extract_strided_slice %3 {offsets = [32, 0], sizes = [8, 256], strides = [1, 1]} : vector<72x256xf32> to vector<8x256xf32>
    %25 = vector.extract_strided_slice %3 {offsets = [40, 0], sizes = [8, 256], strides = [1, 1]} : vector<72x256xf32> to vector<8x256xf32>
    %c255_i32 = arith.constant 255 : i32
    %26 = tpu.dynamic_rotate %25 by %c255_i32 dim 1 : vector<8x256xf32>, i32 -> vector<8x256xf32>
    %c5 = arith.constant 5 : index
    %c0_13 = arith.constant 0 : index
    %c0_14 = arith.constant 0 : index
    %27 = vector.load %arg4[%c5, %c0_13, %c0_14] : memref<9x8x256xf32, #tpu.memory_space<vmem>>, vector<1x8x256xf32>
    %28 = vector.shape_cast %27 : vector<1x8x256xf32> to vector<8x256xf32>
    %29 = arith.mulf %26, %28 : vector<8x256xf32>
    %30 = vector.extract_strided_slice %3 {offsets = [48, 0], sizes = [8, 256], strides = [1, 1]} : vector<72x256xf32> to vector<8x256xf32>
    %c241_i32 = arith.constant 241 : i32
    %31 = tpu.dynamic_rotate %30 by %c241_i32 dim 1 : vector<8x256xf32>, i32 -> vector<8x256xf32>
    %c6 = arith.constant 6 : index
    %c0_15 = arith.constant 0 : index
    %c0_16 = arith.constant 0 : index
    %32 = vector.load %arg4[%c6, %c0_15, %c0_16] : memref<9x8x256xf32, #tpu.memory_space<vmem>>, vector<1x8x256xf32>
    %33 = vector.shape_cast %32 : vector<1x8x256xf32> to vector<8x256xf32>
    %34 = arith.mulf %31, %33 : vector<8x256xf32>
    %35 = vector.extract_strided_slice %3 {offsets = [56, 0], sizes = [8, 256], strides = [1, 1]} : vector<72x256xf32> to vector<8x256xf32>
    %c240_i32 = arith.constant 240 : i32
    %36 = tpu.dynamic_rotate %35 by %c240_i32 dim 1 : vector<8x256xf32>, i32 -> vector<8x256xf32>
    %c7 = arith.constant 7 : index
    %c0_17 = arith.constant 0 : index
    %c0_18 = arith.constant 0 : index
    %37 = vector.load %arg4[%c7, %c0_17, %c0_18] : memref<9x8x256xf32, #tpu.memory_space<vmem>>, vector<1x8x256xf32>
    %38 = vector.shape_cast %37 : vector<1x8x256xf32> to vector<8x256xf32>
    %39 = arith.mulf %36, %38 : vector<8x256xf32>
    %40 = vector.extract_strided_slice %3 {offsets = [64, 0], sizes = [8, 256], strides = [1, 1]} : vector<72x256xf32> to vector<8x256xf32>
    %c239_i32 = arith.constant 239 : i32
    %41 = tpu.dynamic_rotate %40 by %c239_i32 dim 1 : vector<8x256xf32>, i32 -> vector<8x256xf32>
    %c8 = arith.constant 8 : index
    %c0_19 = arith.constant 0 : index
    %c0_20 = arith.constant 0 : index
    %42 = vector.load %arg4[%c8, %c0_19, %c0_20] : memref<9x8x256xf32, #tpu.memory_space<vmem>>, vector<1x8x256xf32>
    %43 = vector.shape_cast %42 : vector<1x8x256xf32> to vector<8x256xf32>
    %44 = arith.mulf %41, %43 : vector<8x256xf32>
    %45 = arith.addf %8, %13 : vector<8x256xf32>
    %46 = arith.addf %18, %23 : vector<8x256xf32>
    %47 = arith.addf %24, %29 : vector<8x256xf32>
    %48 = arith.addf %34, %39 : vector<8x256xf32>
    %49 = arith.addf %45, %46 : vector<8x256xf32>
    %50 = arith.addf %47, %48 : vector<8x256xf32>
    %51 = arith.addf %49, %50 : vector<8x256xf32>
    %52 = arith.addf %51, %44 : vector<8x256xf32>
    %cst_21 = arith.constant dense<0.000000e+00> : vector<8xf32>
    %53 = vector.multi_reduction <add>, %52, %cst_21 [1] : vector<8x256xf32> to vector<8xf32>
    %54 = vector.shape_cast %53 : vector<8xf32> to vector<8x1xf32>
    %cst_22 = arith.constant 2.560000e+02 : f32
    %55 = vector.broadcast %cst_22 : f32 to vector<8x1xf32>
    %56 = arith.divf %54, %55 : vector<8x1xf32>
    %57 = arith.mulf %52, %52 : vector<8x256xf32>
    %cst_23 = arith.constant dense<0.000000e+00> : vector<8xf32>
    %58 = vector.multi_reduction <add>, %57, %cst_23 [1] : vector<8x256xf32> to vector<8xf32>
    %59 = vector.shape_cast %58 : vector<8xf32> to vector<8x1xf32>
    %cst_24 = arith.constant 2.560000e+02 : f32
    %60 = vector.broadcast %cst_24 : f32 to vector<8x1xf32>
    %61 = arith.divf %59, %60 : vector<8x1xf32>
    %62 = arith.mulf %56, %56 : vector<8x1xf32>
    %63 = arith.subf %61, %62 : vector<8x1xf32>
    %cst_25 = arith.constant 0.000000e+00 : f32
    %64 = vector.broadcast %cst_25 : f32 to vector<8x1xf32>
    %65 = arith.maximumf %63, %64 : vector<8x1xf32>
    %66 = vector.broadcast %56 : vector<8x1xf32> to vector<8x256xf32>
    %67 = arith.subf %52, %66 : vector<8x256xf32>
    %cst_26 = arith.constant 9.99999974E-6 : f32
    %68 = vector.broadcast %cst_26 : f32 to vector<8x1xf32>
    %69 = arith.addf %65, %68 : vector<8x1xf32>
    %70 = math.rsqrt %69 : vector<8x1xf32>
    %71 = vector.broadcast %70 : vector<8x1xf32> to vector<8x256xf32>
    %72 = arith.mulf %67, %71 : vector<8x256xf32>
    %cst_27 = arith.constant 2.000000e-01 : f32
    %73 = vector.broadcast %cst_27 : f32 to vector<8x256xf32>
    %74 = arith.mulf %73, %72 : vector<8x256xf32>
    %75 = arith.maximumf %72, %74 : vector<8x256xf32>
    %c0_28 = arith.constant 0 : index
    %c0_29 = arith.constant 0 : index
    %76 = vector.load %arg3[%c0_28, %c0_29] : memref<72x8xf32, #tpu.memory_space<vmem>>, vector<72x8xf32>
    %cst_30 = arith.constant dense<0.000000e+00> : vector<72x256xf32>
    %77 = tpu.matmul %76, %75, %cst_30 {dimension_numbers = #tpu.dot_dimension_numbers<[1], [0], [0], [1], [0, 0, 1, 1], [], []>} : vector<72x8xf32>, vector<8x256xf32>, vector<72x256xf32> -> vector<72x256xf32>
    %78 = vector.extract_strided_slice %77 {offsets = [0, 0], sizes = [8, 256], strides = [1, 1]} : vector<72x256xf32> to vector<8x256xf32>
    %c17_i32_31 = arith.constant 17 : i32
    %79 = tpu.dynamic_rotate %78 by %c17_i32_31 dim 1 : vector<8x256xf32>, i32 -> vector<8x256xf32>
    %c0_32 = arith.constant 0 : index
    %c0_33 = arith.constant 0 : index
    %c0_34 = arith.constant 0 : index
    %80 = vector.load %arg4[%c0_32, %c0_33, %c0_34] : memref<9x8x256xf32, #tpu.memory_space<vmem>>, vector<1x8x256xf32>
    %81 = vector.shape_cast %80 : vector<1x8x256xf32> to vector<8x256xf32>
    %82 = arith.mulf %79, %81 : vector<8x256xf32>
    %83 = vector.extract_strided_slice %77 {offsets = [8, 0], sizes = [8, 256], strides = [1, 1]} : vector<72x256xf32> to vector<8x256xf32>
    %c16_i32_35 = arith.constant 16 : i32
    %84 = tpu.dynamic_rotate %83 by %c16_i32_35 dim 1 : vector<8x256xf32>, i32 -> vector<8x256xf32>
    %c1_36 = arith.constant 1 : index
    %c0_37 = arith.constant 0 : index
    %c0_38 = arith.constant 0 : index
    %85 = vector.load %arg4[%c1_36, %c0_37, %c0_38] : memref<9x8x256xf32, #tpu.memory_space<vmem>>, vector<1x8x256xf32>
    %86 = vector.shape_cast %85 : vector<1x8x256xf32> to vector<8x256xf32>
    %87 = arith.mulf %84, %86 : vector<8x256xf32>
    %88 = vector.extract_strided_slice %77 {offsets = [16, 0], sizes = [8, 256], strides = [1, 1]} : vector<72x256xf32> to vector<8x256xf32>
    %c15_i32_39 = arith.constant 15 : i32
    %89 = tpu.dynamic_rotate %88 by %c15_i32_39 dim 1 : vector<8x256xf32>, i32 -> vector<8x256xf32>
    %c2_40 = arith.constant 2 : index
    %c0_41 = arith.constant 0 : index
    %c0_42 = arith.constant 0 : index
    %90 = vector.load %arg4[%c2_40, %c0_41, %c0_42] : memref<9x8x256xf32, #tpu.memory_space<vmem>>, vector<1x8x256xf32>
    %91 = vector.shape_cast %90 : vector<1x8x256xf32> to vector<8x256xf32>
    %92 = arith.mulf %89, %91 : vector<8x256xf32>
    %93 = vector.extract_strided_slice %77 {offsets = [24, 0], sizes = [8, 256], strides = [1, 1]} : vector<72x256xf32> to vector<8x256xf32>
    %c1_i32_43 = arith.constant 1 : i32
    %94 = tpu.dynamic_rotate %93 by %c1_i32_43 dim 1 : vector<8x256xf32>, i32 -> vector<8x256xf32>
    %c3_44 = arith.constant 3 : index
    %c0_45 = arith.constant 0 : index
    %c0_46 = arith.constant 0 : index
    %95 = vector.load %arg4[%c3_44, %c0_45, %c0_46] : memref<9x8x256xf32, #tpu.memory_space<vmem>>, vector<1x8x256xf32>
    %96 = vector.shape_cast %95 : vector<1x8x256xf32> to vector<8x256xf32>
    %97 = arith.mulf %94, %96 : vector<8x256xf32>
    %98 = vector.extract_strided_slice %77 {offsets = [32, 0], sizes = [8, 256], strides = [1, 1]} : vector<72x256xf32> to vector<8x256xf32>
    %99 = vector.extract_strided_slice %77 {offsets = [40, 0], sizes = [8, 256], strides = [1, 1]} : vector<72x256xf32> to vector<8x256xf32>
    %c255_i32_47 = arith.constant 255 : i32
    %100 = tpu.dynamic_rotate %99 by %c255_i32_47 dim 1 : vector<8x256xf32>, i32 -> vector<8x256xf32>
    %c5_48 = arith.constant 5 : index
    %c0_49 = arith.constant 0 : index
    %c0_50 = arith.constant 0 : index
    %101 = vector.load %arg4[%c5_48, %c0_49, %c0_50] : memref<9x8x256xf32, #tpu.memory_space<vmem>>, vector<1x8x256xf32>
    %102 = vector.shape_cast %101 : vector<1x8x256xf32> to vector<8x256xf32>
    %103 = arith.mulf %100, %102 : vector<8x256xf32>
    %104 = vector.extract_strided_slice %77 {offsets = [48, 0], sizes = [8, 256], strides = [1, 1]} : vector<72x256xf32> to vector<8x256xf32>
    %c241_i32_51 = arith.constant 241 : i32
    %105 = tpu.dynamic_rotate %104 by %c241_i32_51 dim 1 : vector<8x256xf32>, i32 -> vector<8x256xf32>
    %c6_52 = arith.constant 6 : index
    %c0_53 = arith.constant 0 : index
    %c0_54 = arith.constant 0 : index
    %106 = vector.load %arg4[%c6_52, %c0_53, %c0_54] : memref<9x8x256xf32, #tpu.memory_space<vmem>>, vector<1x8x256xf32>
    %107 = vector.shape_cast %106 : vector<1x8x256xf32> to vector<8x256xf32>
    %108 = arith.mulf %105, %107 : vector<8x256xf32>
    %109 = vector.extract_strided_slice %77 {offsets = [56, 0], sizes = [8, 256], strides = [1, 1]} : vector<72x256xf32> to vector<8x256xf32>
    %c240_i32_55 = arith.constant 240 : i32
    %110 = tpu.dynamic_rotate %109 by %c240_i32_55 dim 1 : vector<8x256xf32>, i32 -> vector<8x256xf32>
    %c7_56 = arith.constant 7 : index
    %c0_57 = arith.constant 0 : index
    %c0_58 = arith.constant 0 : index
    %111 = vector.load %arg4[%c7_56, %c0_57, %c0_58] : memref<9x8x256xf32, #tpu.memory_space<vmem>>, vector<1x8x256xf32>
    %112 = vector.shape_cast %111 : vector<1x8x256xf32> to vector<8x256xf32>
    %113 = arith.mulf %110, %112 : vector<8x256xf32>
    %114 = vector.extract_strided_slice %77 {offsets = [64, 0], sizes = [8, 256], strides = [1, 1]} : vector<72x256xf32> to vector<8x256xf32>
    %c239_i32_59 = arith.constant 239 : i32
    %115 = tpu.dynamic_rotate %114 by %c239_i32_59 dim 1 : vector<8x256xf32>, i32 -> vector<8x256xf32>
    %c8_60 = arith.constant 8 : index
    %c0_61 = arith.constant 0 : index
    %c0_62 = arith.constant 0 : index
    %116 = vector.load %arg4[%c8_60, %c0_61, %c0_62] : memref<9x8x256xf32, #tpu.memory_space<vmem>>, vector<1x8x256xf32>
    %117 = vector.shape_cast %116 : vector<1x8x256xf32> to vector<8x256xf32>
    %118 = arith.mulf %115, %117 : vector<8x256xf32>
    %119 = arith.addf %82, %87 : vector<8x256xf32>
    %120 = arith.addf %92, %97 : vector<8x256xf32>
    %121 = arith.addf %98, %103 : vector<8x256xf32>
    %122 = arith.addf %108, %113 : vector<8x256xf32>
    %123 = arith.addf %119, %120 : vector<8x256xf32>
    %124 = arith.addf %121, %122 : vector<8x256xf32>
    %125 = arith.addf %123, %124 : vector<8x256xf32>
    %126 = arith.addf %125, %118 : vector<8x256xf32>
    %cst_63 = arith.constant dense<0.000000e+00> : vector<8xf32>
    %127 = vector.multi_reduction <add>, %126, %cst_63 [1] : vector<8x256xf32> to vector<8xf32>
    %128 = vector.shape_cast %127 : vector<8xf32> to vector<8x1xf32>
    %cst_64 = arith.constant 2.560000e+02 : f32
    %129 = vector.broadcast %cst_64 : f32 to vector<8x1xf32>
    %130 = arith.divf %128, %129 : vector<8x1xf32>
    %131 = arith.mulf %126, %126 : vector<8x256xf32>
    %cst_65 = arith.constant dense<0.000000e+00> : vector<8xf32>
    %132 = vector.multi_reduction <add>, %131, %cst_65 [1] : vector<8x256xf32> to vector<8xf32>
    %133 = vector.shape_cast %132 : vector<8xf32> to vector<8x1xf32>
    %cst_66 = arith.constant 2.560000e+02 : f32
    %134 = vector.broadcast %cst_66 : f32 to vector<8x1xf32>
    %135 = arith.divf %133, %134 : vector<8x1xf32>
    %136 = arith.mulf %130, %130 : vector<8x1xf32>
    %137 = arith.subf %135, %136 : vector<8x1xf32>
    %cst_67 = arith.constant 0.000000e+00 : f32
    %138 = vector.broadcast %cst_67 : f32 to vector<8x1xf32>
    %139 = arith.maximumf %137, %138 : vector<8x1xf32>
    %140 = vector.broadcast %130 : vector<8x1xf32> to vector<8x256xf32>
    %141 = arith.subf %126, %140 : vector<8x256xf32>
    %cst_68 = arith.constant 9.99999974E-6 : f32
    %142 = vector.broadcast %cst_68 : f32 to vector<8x1xf32>
    %143 = arith.addf %139, %142 : vector<8x1xf32>
    %144 = math.rsqrt %143 : vector<8x1xf32>
    %145 = vector.broadcast %144 : vector<8x1xf32> to vector<8x256xf32>
    %146 = arith.mulf %141, %145 : vector<8x256xf32>
    %cst_69 = arith.constant 2.000000e-01 : f32
    %147 = vector.broadcast %cst_69 : f32 to vector<8x256xf32>
    %148 = arith.mulf %147, %146 : vector<8x256xf32>
    %149 = arith.maximumf %146, %148 : vector<8x256xf32>
    %c0_70 = arith.constant 0 : index
    %c0_71 = arith.constant 0 : index
    %c0_72 = arith.constant 0 : index
    %150 = vector.load %arg5[%c0_70, %c0_71, %c0_72] : memref<1x8x256xf32, #tpu.memory_space<vmem>>, vector<1x8x256xf32>
    %151 = vector.shape_cast %150 : vector<1x8x256xf32> to vector<8x256xf32>
    %152 = vector.shape_cast %149 : vector<8x256xf32> to vector<1x8x256xf32>
    tpu.vector_store %arg5[%c0_70, %c0_71, %c0_72], %152 {strides = array<i32>} : memref<1x8x256xf32, #tpu.memory_space<vmem>>, vector<1x8x256xf32>,
    return
  }
  func.func @transform_0(%arg0: i32) -> (i32, i32, i32) {
    %c0_i32 = arith.constant 0 : i32
    %c0_i32_0 = arith.constant 0 : i32
    %c0_i32_1 = arith.constant 0 : i32
    return %arg0, %c0_i32, %c0_i32_0 : i32, i32, i32
  }
  func.func @transform_1(%arg0: i32) -> (i32, i32) {
    %c0_i32 = arith.constant 0 : i32
    %c0_i32_0 = arith.constant 0 : i32
    %c0_i32_1 = arith.constant 0 : i32
    return %c0_i32, %c0_i32_0 : i32, i32
  }
  func.func @transform_2(%arg0: i32) -> (i32, i32) {
    %c0_i32 = arith.constant 0 : i32
    %c0_i32_0 = arith.constant 0 : i32
    %c0_i32_1 = arith.constant 0 : i32
    return %c0_i32, %c0_i32_0 : i32, i32
  }
  func.func @transform_3(%arg0: i32) -> (i32, i32, i32) {
    %c0_i32 = arith.constant 0 : i32
    %c0_i32_0 = arith.constant 0 : i32
    %c0_i32_1 = arith.constant 0 : i32
    %c0_i32_2 = arith.constant 0 : i32
    return %c0_i32, %c0_i32_0, %c0_i32_1 : i32, i32, i32
  }
  func.func @transform_4(%arg0: i32) -> (i32, i32, i32) {
    %c0_i32 = arith.constant 0 : i32
    %c0_i32_0 = arith.constant 0 : i32
    %c0_i32_1 = arith.constant 0 : i32
    return %arg0, %c0_i32, %c0_i32_0 : i32, i32, i32
  }
}

</mosaic_0001>

<llo_original>
// kernel: double_conv_block.1
$region0: #{double_conv_block.1}
  #allocation0 [shape = 'u32[]', space=smem, size = 0x4, offset = 0x4, fixed_abs, tag = 'smem constant byte address 0x4 - core index']
  #allocation1 [shape = 'u32[144,128]{1,0:T(1,128)}', space=vmem, size = 0x12000, scoped, tag = 'internal scratch']
  %s0 = inlined_call_operand.vmem [shape: f32[2,4,256], index: 0, kind: input, shape index: {}]
  %s1 = inlined_call_operand.vmem [shape: f32[72,4], index: 1, kind: input, shape index: {}]
  %s2 = inlined_call_operand.vmem [shape: f32[72,8], index: 2, kind: input, shape index: {}]
  %s3 = inlined_call_operand.vmem [shape: f32[9,8,256], index: 3, kind: input, shape index: {}]
  %s4 = inlined_call_operand.vmem [shape: f32[2,8,256], index: 4, kind: output, shape index: {}]
  %s5 = sld [smem:[#allocation0]]
  $region49: #{double_conv_block.1} parent=0
    _
  %s7 = ssub.s32 1, %s5
  %s8 = scalar_select 0, %s7, %s5
  loop: start=0, step=1, limit=4
  $region2: #{double_conv_block.1} parent=0 // loop_pre_header
    _
  $region3: #{double_conv_block.1} parent=0 // loop_header
    %s10 = sphi 0, %s14
    %p11 = scmp.ge.s32.totalorder %s10, 4
    %s20 = sphi 0, %s22
    %s23 = sphi 0, %s20
    %s24 = sphi 0, %s23
    %s40 = sphi 0, %s24
    %s44 = sphi 0, %s44
    %s46 = sphi 0, %s44
    %s47 = sphi 0, %s46
    %s61 = sphi 0, %s47
    %s65 = sphi 0, %s65
    %s67 = sphi 0, %s65
    %s68 = sphi 0, %s67
    %s82 = sphi 0, %s68
    %s86 = sphi 0, %s86
    %s88 = sphi 0, %s86
    %s89 = sphi 0, %s88
    %s103 = sphi 0, %s89
    %s109 = sphi 0, %s111
    %s112 = sphi 0, %s109
    %s113 = sphi 0, %s112
    %s129 = sphi 0, %s113
  $region4: #{double_conv_block.1} parent=0 // loop_header_branch
    %13 = sbr.rel (%p11) target = $region8
  $region5: #{double_conv_block.1} parent=0 // loop_body
    %s15 = ssub.s32 %s10, 1
    %s16 = ssub.s32 %s10, 2
    %s17 = sadd.s32 %s10, 1
    %s18 = ssub.s32 %s10, %s17
    %p19 = scmp.eq.s32.totalorder %s18, 0
    %s21 = sadd.s32 %s20, 1
    %s22 = scalar_select %p19, %s20, %s21
    %p25 = pneg %p19
    %p26 = scmp.eq.s32.totalorder %s10, 1
    %p27 = por %p25, %p26
    %p28 = scmp.ne.s32.totalorder %s20, %s23
    %p29 = scmp.eq.s32.totalorder %s10, 0
    %p30 = por %p28, %p29
    %p31 = scmp.ne.s32.totalorder %s20, %s23
    %p32 = scmp.eq.s32.totalorder %s15, 1
    %p33 = por %p31, %p32
    %p34 = scmp.ne.s32.totalorder %s23, %s24
    %p35 = scmp.eq.s32.totalorder %s15, 0
    %p36 = por %p34, %p35
    %p37 = scmp.ne.s32.totalorder %s23, %s24
    %p38 = scmp.eq.s32.totalorder %s16, 1
    %p39 = por %p37, %p38
    %p41 = scmp.ne.s32.totalorder %s24, %s40
    %p42 = scmp.eq.s32.totalorder %s16, 0
    %p43 = por %p41, %p42
    %s45 = sadd.s32 %s44, 1
    %p48 = scmp.eq.s32.totalorder %s10, 1
    %p49 = scmp.ne.s32.totalorder %s44, %s46
    %p50 = scmp.eq.s32.totalorder %s10, 0
    %p51 = por %p49, %p50
    %p52 = scmp.ne.s32.totalorder %s44, %s46
    %p53 = scmp.eq.s32.totalorder %s15, 1
    %p54 = por %p52, %p53
    %p55 = scmp.ne.s32.totalorder %s46, %s47
    %p56 = scmp.eq.s32.totalorder %s15, 0
    %p57 = por %p55, %p56
    %p58 = scmp.ne.s32.totalorder %s46, %s47
    %p59 = scmp.eq.s32.totalorder %s16, 1
    %p60 = por %p58, %p59
    %p62 = scmp.ne.s32.totalorder %s47, %s61
    %p63 = scmp.eq.s32.totalorder %s16, 0
    %p64 = por %p62, %p63
    %s66 = sadd.s32 %s65, 1
    %p69 = scmp.eq.s32.totalorder %s10, 1
    %p70 = scmp.ne.s32.totalorder %s65, %s67
    %p71 = scmp.eq.s32.totalorder %s10, 0
    %p72 = por %p70, %p71
    %p73 = scmp.ne.s32.totalorder %s65, %s67
    %p74 = scmp.eq.s32.totalorder %s15, 1
    %p75 = por %p73, %p74
    %p76 = scmp.ne.s32.totalorder %s67, %s68
    %p77 = scmp.eq.s32.totalorder %s15, 0
    %p78 = por %p76, %p77
    %p79 = scmp.ne.s32.totalorder %s67, %s68
    %p80 = scmp.eq.s32.totalorder %s16, 1
    %p81 = por %p79, %p80
    %p83 = scmp.ne.s32.totalorder %s68, %s82
    %p84 = scmp.eq.s32.totalorder %s16, 0
    %p85 = por %p83, %p84
    %s87 = sadd.s32 %s86, 1
    %p90 = scmp.eq.s32.totalorder %s10, 1
    %p91 = scmp.ne.s32.totalorder %s86, %s88
    %p92 = scmp.eq.s32.totalorder %s10, 0
    %p93 = por %p91, %p92
    %p94 = scmp.ne.s32.totalorder %s86, %s88
    %p95 = scmp.eq.s32.totalorder %s15, 1
    %p96 = por %p94, %p95
    %p97 = scmp.ne.s32.totalorder %s88, %s89
    %p98 = scmp.eq.s32.totalorder %s15, 0
    %p99 = por %p97, %p98
    %p100 = scmp.ne.s32.totalorder %s88, %s89
    %p101 = scmp.eq.s32.totalorder %s16, 1
    %p102 = por %p100, %p101
    %p104 = scmp.ne.s32.totalorder %s89, %s103
    %p105 = scmp.eq.s32.totalorder %s16, 0
    %p106 = por %p104, %p105
    %s107 = ssub.s32 %s10, %s17
    %p108 = scmp.eq.s32.totalorder %s107, 0
    %s110 = sadd.s32 %s109, 1
    %s111 = scalar_select %p108, %s109, %s110
    %p114 = pneg %p108
    %p115 = scmp.eq.s32.totalorder %s10, 1
    %p116 = por %p114, %p115
    %p117 = scmp.ne.s32.totalorder %s109, %s112
    %p118 = scmp.eq.s32.totalorder %s10, 0
    %p119 = por %p117, %p118
    %p120 = scmp.ne.s32.totalorder %s109, %s112
    %p121 = scmp.eq.s32.totalorder %s15, 1
    %p122 = por %p120, %p121
    %p123 = scmp.ne.s32.totalorder %s112, %s113
    %p124 = scmp.eq.s32.totalorder %s15, 0
    %p125 = por %p123, %p124
    %p126 = scmp.ne.s32.totalorder %s112, %s113
    %p127 = scmp.eq.s32.totalorder %s16, 1
    %p128 = por %p126, %p127
    %p130 = scmp.ne.s32.totalorder %s113, %s129
    %p131 = scmp.eq.s32.totalorder %s16, 0
    %p132 = por %p130, %p131
    %p133 = scmp.le.s32.totalorder 1, %s10
    %p134 = scmp.lt.s32.totalorder %s10, 3
    %p135 = pnand %p133, %p134
    %p136 = pneg %p135
    // Predicated region
    $region9: #{double_conv_block.1} parent=5 // pred_check
      _
    $region10: #{double_conv_block.1} parent=5 // pred_check_branch
      %138 = sbr.rel (%p135) target = $region12
    $region11: #{double_conv_block.1} parent=5 // pred_region
      %s139 = ssub.s32 %s10, 1
      // Predicated region
      $region13: #{double_conv_block.1} parent=11 // pred_check
        %p140 = pneg %p57
      $region14: #{double_conv_block.1} parent=11 // pred_check_branch
        %142 = sbr.rel (%p140) target = $region16
      $region15: #{double_conv_block.1} parent=11 // pred_region
        _
      $region16: #{double_conv_block.1} parent=11 // pred_fallthru
        _
      // Predicated region
      $region17: #{double_conv_block.1} parent=11 // pred_check
        %p143 = pneg %p78
      $region18: #{double_conv_block.1} parent=11 // pred_check_branch
        %145 = sbr.rel (%p143) target = $region20
      $region19: #{double_conv_block.1} parent=11 // pred_region
        _
      $region20: #{double_conv_block.1} parent=11 // pred_fallthru
        _
      // Predicated region
      $region21: #{double_conv_block.1} parent=11 // pred_check
        %p146 = pneg %p99
      $region22: #{double_conv_block.1} parent=11 // pred_check_branch
        %148 = sbr.rel (%p146) target = $region24
      $region23: #{double_conv_block.1} parent=11 // pred_region
        _
      $region24: #{double_conv_block.1} parent=11 // pred_fallthru
        _
    $region12: #{double_conv_block.1} parent=5 // pred_fallthru
      _
    %p149 = scmp.lt.s32.totalorder %s10, 2
    // Predicated region
    $region25: #{double_conv_block.1} parent=5 // pred_check
      %p150 = pneg %p149
    $region26: #{double_conv_block.1} parent=5 // pred_check_branch
      %152 = sbr.rel (%p150) target = $region28
    $region27: #{double_conv_block.1} parent=5 // pred_region
      // Predicated region
      $region29: #{double_conv_block.1} parent=27 // pred_check
        %p153 = pneg %p30
      $region30: #{double_conv_block.1} parent=27 // pred_check_branch
        %155 = sbr.rel (%p153) target = $region32
      $region31: #{double_conv_block.1} parent=27 // pred_region
        %p156 = scmp.lt.s32.totalorder %s10, 1
        %s157 = scalar_select %p156, %s10, 1
        %s158 = smul.addr %s157, 2
        %s159 = smul.addr %s158, 4
        %s160 = scalar_lea.vmem %s0, %s159
      $region32: #{double_conv_block.1} parent=27 // pred_fallthru
        _
    $region28: #{double_conv_block.1} parent=5 // pred_fallthru
      _
    %p161 = scmp.le.s32.totalorder 1, %s10
    %p162 = scmp.lt.s32.totalorder %s10, 3
    %p163 = pnand %p161, %p162
    %p164 = pneg %p163
    // Predicated region
    $region33: #{double_conv_block.1} parent=5 // pred_check
      _
    $region34: #{double_conv_block.1} parent=5 // pred_check_branch
      %166 = sbr.rel (%p163) target = $region36
    $region35: #{double_conv_block.1} parent=5 // pred_region
      %s167 = ssub.s32 %s10, 1
      %p168 = scmp.lt.s32.totalorder %s15, 1
      %s169 = scalar_select %p168, %s15, 1
      %s170 = smul.addr %s169, 2
      %s171 = smul.addr %s170, 4
      %s172 = scalar_lea.vmem %s0, %s171
      %p173 = pneg %p36
      %p174 = pneg %p33
      %p175 = pneg %p57
      %p176 = pneg %p54
      %p177 = pneg %p78
      %p178 = pneg %p75
      %p179 = pneg %p99
      %p180 = pneg %p96
      %p181 = pneg %p125
      %p182 = pneg %p122
      %p183 = scmp.lt.s32.totalorder %s15, 1
      %s184 = scalar_select %p183, %s15, 1
      %s185 = smul.addr %s184, 2
      %s186 = smul.addr %s185, 8
      %s187 = scalar_lea.vmem %s4, %s186
      %p188 = scmp.lt.s32.totalorder %s15, 1
      %s189 = scalar_select %p188, %s15, 1
      %s190 = smul.addr %s189, 2
      %s191 = smul.addr %s190, 4
      %s192 = scalar_lea.vmem %s0, %s191
      %p193 = scmp.lt.s32.totalorder %s15, 1
      %s194 = scalar_select %p193, %s15, 1
      %s195 = smul.addr %s194, 2
      %s196 = smul.addr %s195, 8
      %s197 = scalar_lea.vmem %s4, %s196
      %v198 = vld [vmem:[%s192] sm:$0xff]
      %v199 = vld [vmem:[%s1] sm:$0xff]
      %v200 = vld [vmem:[%s1 + $0x8] sm:$0xff]
      %v201 = vld [vmem:[%s1 + $0x10] sm:$0xff]
      %v202 = vld [vmem:[%s1 + $0x18] sm:$0xff]
      %v203 = vld [vmem:[%s1 + $0x20] sm:$0xff]
      %v204 = vld [vmem:[%s1 + $0x28] sm:$0xff]
      %v205 = vld [vmem:[%s1 + $0x30] sm:$0xff]
      %v206 = vld [vmem:[%s1 + $0x38] sm:$0xff]
      %v207 = vld [vmem:[%s1 + $0x40] sm:$0xff]
      %v209 = vcombine.high %v198, %v198
      %vm210 = vcmask 31744
      %v212 = vsel %vm210, %v199, 0
      %v215 = vsel %vm210, %v200, 0
      %v218 = vsel %vm210, %v201, 0
      %v221 = vsel %vm210, %v202, 0
      %v224 = vsel %vm210, %v203, 0
      %v227 = vsel %vm210, %v204, 0
      %v230 = vsel %vm210, %v205, 0
      %v233 = vsel %vm210, %v206, 0
      %v236 = vsel %vm210, %v207, 0
      %vm238 = vcmask 1043456
      %v239 = vsel %vm238, %v198, 0
      %v241 = vsel %vm238, %v209, 0
      %243 = vmatprep.subr.mxu0 0.0
      %244 = vmatpush1.msra.mxu0 0.0
      %245 = vmatprep.subr.mxu0 0.0
      %246 = vmatpush1.msra.mxu0 0.0
      %247 = vmatprep.subr.mxu0 0.0
      %248 = vmatpush1.msra.mxu0 0.0
      %249 = vmatprep.subr.mxu0 0.0
      %250 = vmatpush1.msra.mxu0 0.0
      %251 = vmatprep.subr.mxu0 0.0
      %252 = vmatpush1.msra.mxu0 0.0
      %253 = vmatprep.subr.mxu0 0.0
      %254 = vmatpush1.msra.mxu0 0.0
      %255 = vmatprep.subr.mxu0 0.0
      %256 = vmatpush1.msra.mxu0 0.0
      %257 = vmatprep.subr.mxu0 0.0
      %258 = vmatpush1.msra.mxu0 0.0
      %259 = vmatprep.subr.mxu0 0.0
      %260 = vmatpush1.msra.mxu0 0.0
      %261 = vmatprep.subr.mxu0 0.0
      %262 = vmatpush1.msra.mxu0 0.0
      %263 = vmatprep.subr.mxu0 0.0
      %264 = vmatpush1.msra.mxu0 0.0
      %265 = vmatprep.subr.mxu0 0.0
      %266 = vmatpush1.msra.mxu0 0.0
      %267 = vmatprep.subr.mxu0 0.0
      %268 = vmatpush1.msra.mxu0 0.0
      %269 = vmatprep.subr.mxu0 0.0
      %270 = vmatpush1.msra.mxu0 0.0
      %271 = vmatprep.subr.mxu0 0.0
      %272 = vmatpush1.msra.mxu0 0.0
      %273 = vmatprep.subr.mxu0 %v241
      %274 = vmatpush1.msra.mxu0 %v239
      %275 = vmatprep.subr.mxu0 0.0
      %276 = vmatpush2.msra.mxu0 0.0
      %277 = vmatprep.subr.mxu0 0.0
      %278 = vmatpush2.msra.mxu0 0.0
      %279 = vmatprep.subr.mxu0 0.0
      %280 = vmatpush2.msra.mxu0 0.0
      %281 = vmatprep.subr.mxu0 0.0
      %282 = vmatpush2.msra.mxu0 0.0
      %283 = vmatprep.subr.mxu0 0.0
      %284 = vmatpush2.msra.mxu0 0.0
      %285 = vmatprep.subr.mxu0 0.0
      %286 = vmatpush2.msra.mxu0 0.0
      %287 = vmatprep.subr.mxu0 0.0
      %288 = vmatpush2.msra.mxu0 0.0
      %289 = vmatprep.subr.mxu0 0.0
      %290 = vmatpush2.msra.mxu0 0.0
      %291 = vmatprep.subr.mxu0 0.0
      %292 = vmatpush2.msra.mxu0 0.0
      %293 = vmatprep.subr.mxu0 0.0
      %294 = vmatpush2.msra.mxu0 0.0
      %295 = vmatprep.subr.mxu0 0.0
      %296 = vmatpush2.msra.mxu0 0.0
      %297 = vmatprep.subr.mxu0 0.0
      %298 = vmatpush2.msra.mxu0 0.0
      %299 = vmatprep.subr.mxu0 0.0
      %300 = vmatpush2.msra.mxu0 0.0
      %301 = vmatprep.subr.mxu0 0.0
      %302 = vmatpush2.msra.mxu0 0.0
      %303 = vmatprep.subr.mxu0 0.0
      %304 = vmatpush2.msra.mxu0 0.0
      %305 = vmatprep.subr.mxu0 0.0
      %306 = vmatpush2.msra.mxu0 0.0
      %307 = vmatprep.mubr.f32.mxu0 0.0
      %308 = vmatmul.mubr.f32.gmra.mxu0 %v212
      %v309 = vpop.f32.mrf.mxu0
      %v310 = vadd.f32 0.0, %v309
      %v311 = vpop.f32.mrf.mxu0
      %v312 = vadd.f32 0.0, %v311
      %313 = vmatprep.mubr.f32.mxu0 0.0
      %314 = vmatmul.mubr.f32.gmra.mxu0 %v215
      %v315 = vpop.f32.mrf.mxu0
      %v316 = vadd.f32 0.0, %v315
      %v317 = vpop.f32.mrf.mxu0
      %v318 = vadd.f32 0.0, %v317
      %319 = vmatprep.mubr.f32.mxu0 0.0
      %320 = vmatmul.mubr.f32.gmra.mxu0 %v218
      %v321 = vpop.f32.mrf.mxu0
      %v322 = vadd.f32 0.0, %v321
      %v323 = vpop.f32.mrf.mxu0
      %v324 = vadd.f32 0.0, %v323
      %325 = vmatprep.mubr.f32.mxu0 0.0
      %326 = vmatmul.mubr.f32.gmra.mxu0 %v221
      %v327 = vpop.f32.mrf.mxu0
      %v328 = vadd.f32 0.0, %v327
      %v329 = vpop.f32.mrf.mxu0
      %v330 = vadd.f32 0.0, %v329
      %331 = vmatprep.mubr.f32.mxu0 0.0
      %332 = vmatmul.mubr.f32.gmra.mxu0 %v224
      %v333 = vpop.f32.mrf.mxu0
      %v334 = vadd.f32 0.0, %v333
      %v335 = vpop.f32.mrf.mxu0
      %v336 = vadd.f32 0.0, %v335
      %337 = vmatprep.mubr.f32.mxu0 0.0
      %338 = vmatmul.mubr.f32.gmra.mxu0 %v227
      %v339 = vpop.f32.mrf.mxu0
      %v340 = vadd.f32 0.0, %v339
      %v341 = vpop.f32.mrf.mxu0
      %v342 = vadd.f32 0.0, %v341
      %343 = vmatprep.mubr.f32.mxu0 0.0
      %344 = vmatmul.mubr.f32.gmra.mxu0 %v230
      %v345 = vpop.f32.mrf.mxu0
      %v346 = vadd.f32 0.0, %v345
      %v347 = vpop.f32.mrf.mxu0
      %v348 = vadd.f32 0.0, %v347
      %349 = vmatprep.mubr.f32.mxu0 0.0
      %350 = vmatmul.mubr.f32.gmra.mxu0 %v233
      %v351 = vpop.f32.mrf.mxu0
      %v352 = vadd.f32 0.0, %v351
      %v353 = vpop.f32.mrf.mxu0
      %v354 = vadd.f32 0.0, %v353
      %355 = vmatprep.mubr.f32.mxu0 0.0
      %356 = vmatmul.mubr.f32.gmra.mxu0 %v236
      %v357 = vpop.f32.mrf.mxu0
      %v358 = vadd.f32 0.0, %v357
      %v359 = vpop.f32.mrf.mxu0
      %v360 = vadd.f32 0.0, %v359
      %361 = vdwg.mxu0
      %362 = vrot.lane.b32.xlu0 %v310, 17
      %v363 = vpop.permute.xlu0 %362
      %364 = vrot.lane.b32.xlu0 %v312, 17
      %v365 = vpop.permute.xlu0 %364
      %v366 = vlaneseq
      %v367 = vand.u32 %v366, 127
      %vm368 = vcmp.lt.s32.totalorder %v367, 17
      %v369 = vsel %vm368, %v363, %v365
      %v370 = vsel %vm368, %v365, %v363
      %v371 = vld [vmem:[%s3] sm:$0xff]
      %v372 = vld [vmem:[%s3 + $0x8] sm:$0xff]
      %v373 = vmul.f32 %v370, %v371
      %v374 = vmul.f32 %v369, %v372
      %375 = vrot.lane.b32.xlu0 %v316, 16
      %v376 = vpop.permute.xlu0 %375
      %377 = vrot.lane.b32.xlu0 %v318, 16
      %v378 = vpop.permute.xlu0 %377
      %vm379 = vcmp.lt.s32.totalorder %v367, 16
      %v380 = vsel %vm379, %v376, %v378
      %v381 = vsel %vm379, %v378, %v376
      %s382 = scalar_lea.vmem %s3, 16
      %v383 = vld [vmem:[%s382] sm:$0xff]
      %v384 = vld [vmem:[%s382 + $0x8] sm:$0xff]
      %v385 = vmul.f32 %v381, %v383
      %v386 = vmul.f32 %v380, %v384
      %387 = vrot.lane.b32.xlu0 %v322, 15
      %v388 = vpop.permute.xlu0 %387
      %389 = vrot.lane.b32.xlu0 %v324, 15
      %v390 = vpop.permute.xlu0 %389
      %vm391 = vcmp.lt.s32.totalorder %v367, 15
      %v392 = vsel %vm391, %v388, %v390
      %v393 = vsel %vm391, %v390, %v388
      %s394 = scalar_lea.vmem %s3, 32
      %v395 = vld [vmem:[%s394] sm:$0xff]
      %v396 = vld [vmem:[%s394 + $0x8] sm:$0xff]
      %v397 = vmul.f32 %v393, %v395
      %v398 = vmul.f32 %v392, %v396
      %399 = vrot.lane.b32.xlu0 %v328, 1
      %v400 = vpop.permute.xlu0 %399
      %401 = vrot.lane.b32.xlu0 %v330, 1
      %v402 = vpop.permute.xlu0 %401
      %vm403 = vcmp.lt.s32.totalorder %v367, 1
      %v404 = vsel %vm403, %v400, %v402
      %v405 = vsel %vm403, %v402, %v400
      %s406 = scalar_lea.vmem %s3, 48
      %v407 = vld [vmem:[%s406] sm:$0xff]
      %v408 = vld [vmem:[%s406 + $0x8] sm:$0xff]
      %v409 = vmul.f32 %v405, %v407
      %v410 = vmul.f32 %v404, %v408
      %411 = vrot.lane.b32.xlu0 %v340, 127
      %v412 = vpop.permute.xlu0 %411
      %413 = vrot.lane.b32.xlu0 %v342, 127
      %v414 = vpop.permute.xlu0 %413
      %vm415 = vcmp.lt.s32.totalorder %v367, 127
      %v416 = vsel %vm415, %v412, %v414
      %v417 = vsel %vm415, %v414, %v412
      %s418 = scalar_lea.vmem %s3, 80
      %v419 = vld [vmem:[%s418] sm:$0xff]
      %v420 = vld [vmem:[%s418 + $0x8] sm:$0xff]
      %v421 = vmul.f32 %v416, %v419
      %v422 = vmul.f32 %v417, %v420
      %423 = vrot.lane.b32.xlu0 %v346, 113
      %v424 = vpop.permute.xlu0 %423
      %425 = vrot.lane.b32.xlu0 %v348, 113
      %v426 = vpop.permute.xlu0 %425
      %vm427 = vcmp.lt.s32.totalorder %v367, 113
      %v428 = vsel %vm427, %v424, %v426
      %v429 = vsel %vm427, %v426, %v424
      %s430 = scalar_lea.vmem %s3, 96
      %v431 = vld [vmem:[%s430] sm:$0xff]
      %v432 = vld [vmem:[%s430 + $0x8] sm:$0xff]
      %v433 = vmul.f32 %v428, %v431
      %v434 = vmul.f32 %v429, %v432
      %435 = vrot.lane.b32.xlu0 %v352, 112
      %v436 = vpop.permute.xlu0 %435
      %437 = vrot.lane.b32.xlu0 %v354, 112
      %v438 = vpop.permute.xlu0 %437
      %vm439 = vcmp.lt.s32.totalorder %v367, 112
      %v440 = vsel %vm439, %v436, %v438
      %v441 = vsel %vm439, %v438, %v436
      %s442 = scalar_lea.vmem %s3, 112
      %v443 = vld [vmem:[%s442] sm:$0xff]
      %v444 = vld [vmem:[%s442 + $0x8] sm:$0xff]
      %v445 = vmul.f32 %v440, %v443
      %v446 = vmul.f32 %v441, %v444
      %447 = vrot.lane.b32.xlu0 %v358, 111
      %v448 = vpop.permute.xlu0 %447
      %449 = vrot.lane.b32.xlu0 %v360, 111
      %v450 = vpop.permute.xlu0 %449
      %vm451 = vcmp.lt.s32.totalorder %v367, 111
      %v452 = vsel %vm451, %v448, %v450
      %v453 = vsel %vm451, %v450, %v448
      %s454 = scalar_lea.vmem %s3, 128
      %v455 = vld [vmem:[%s454] sm:$0xff]
      %v456 = vld [vmem:[%s454 + $0x8] sm:$0xff]
      %v457 = vmul.f32 %v452, %v455
      %v458 = vmul.f32 %v453, %v456
      %v459 = vadd.f32 %v373, %v385
      %v460 = vadd.f32 %v374, %v386
      %v461 = vadd.f32 %v397, %v409
      %v462 = vadd.f32 %v398, %v410
      %v463 = vadd.f32 %v334, %v421
      %v464 = vadd.f32 %v336, %v422
      %v465 = vadd.f32 %v433, %v445
      %v466 = vadd.f32 %v434, %v446
      %v467 = vadd.f32 %v459, %v461
      %v468 = vadd.f32 %v460, %v462
      %v469 = vadd.f32 %v463, %v465
      %v470 = vadd.f32 %v464, %v466
      %v471 = vadd.f32 %v467, %v469
      %v472 = vadd.f32 %v468, %v470
      %v473 = vadd.f32 %v471, %v457
      %v474 = vadd.f32 %v472, %v458
      %v475 = vadd.f32 %v473, %v474
      %476 = vadd.xlane.f32.xlu0 %v475
      %v477 = vpop.xlane.xlu0 %476
      %v478 = vrcp.pop 256.0
      %v479 = vmul.f32 %v477, %v478
      %v480 = vmul.f32 %v473, %v473
      %v481 = vmul.f32 %v474, %v474
      %v482 = vadd.f32 %v480, %v481
      %483 = vadd.xlane.f32.xlu0 %v482
      %v484 = vpop.xlane.xlu0 %483
      %v485 = vmul.f32 %v484, %v478
      %v486 = vmul.f32 %v479, %v479
      %v487 = vsub.f32 %v485, %v486
      %v488 = vmax.f32 %v487, 0.0
      %v489 = vsub.f32 %v473, %v479
      %v490 = vsub.f32 %v474, %v479
      %v491 = vadd.f32 %v488, 1e-05
      %v492 = vrsqrt.pop %v491
      %v493 = vmul.f32 %v489, %v492
      %v494 = vmul.f32 %v490, %v492
      %v495 = vmul.f32 %v493, 0.2
      %v496 = vmul.f32 %v494, 0.2
      %v497 = vmax.f32 %v493, %v495
      %v498 = vmax.f32 %v494, %v496
      %v499 = vld [vmem:[%s2] sm:$0xff]
      %v500 = vld [vmem:[%s2 + $0x8] sm:$0xff]
      %v501 = vld [vmem:[%s2 + $0x10] sm:$0xff]
      %v502 = vld [vmem:[%s2 + $0x18] sm:$0xff]
      %v503 = vld [vmem:[%s2 + $0x20] sm:$0xff]
      %v504 = vld [vmem:[%s2 + $0x28] sm:$0xff]
      %v505 = vld [vmem:[%s2 + $0x30] sm:$0xff]
      %v506 = vld [vmem:[%s2 + $0x38] sm:$0xff]
      %v507 = vld [vmem:[%s2 + $0x40] sm:$0xff]
      %vm508 = vcmask 64512
      %v510 = vsel %vm508, %v499, 0
      %v513 = vsel %vm508, %v500, 0
      %v516 = vsel %vm508, %v501, 0
      %v519 = vsel %vm508, %v502, 0
      %v522 = vsel %vm508, %v503, 0
      %v525 = vsel %vm508, %v504, 0
      %v528 = vsel %vm508, %v505, 0
      %v531 = vsel %vm508, %v506, 0
      %v534 = vsel %vm508, %v507, 0
      %536 = vmatprep.subr.mxu0 0.0
      %537 = vmatpush1.msra.mxu0 0.0
      %538 = vmatprep.subr.mxu0 0.0
      %539 = vmatpush1.msra.mxu0 0.0
      %540 = vmatprep.subr.mxu0 0.0
      %541 = vmatpush1.msra.mxu0 0.0
      %542 = vmatprep.subr.mxu0 0.0
      %543 = vmatpush1.msra.mxu0 0.0
      %544 = vmatprep.subr.mxu0 0.0
      %545 = vmatpush1.msra.mxu0 0.0
      %546 = vmatprep.subr.mxu0 0.0
      %547 = vmatpush1.msra.mxu0 0.0
      %548 = vmatprep.subr.mxu0 0.0
      %549 = vmatpush1.msra.mxu0 0.0
      %550 = vmatprep.subr.mxu0 0.0
      %551 = vmatpush1.msra.mxu0 0.0
      %552 = vmatprep.subr.mxu0 0.0
      %553 = vmatpush1.msra.mxu0 0.0
      %554 = vmatprep.subr.mxu0 0.0
      %555 = vmatpush1.msra.mxu0 0.0
      %556 = vmatprep.subr.mxu0 0.0
      %557 = vmatpush1.msra.mxu0 0.0
      %558 = vmatprep.subr.mxu0 0.0
      %559 = vmatpush1.msra.mxu0 0.0
      %560 = vmatprep.subr.mxu0 0.0
      %561 = vmatpush1.msra.mxu0 0.0
      %562 = vmatprep.subr.mxu0 0.0
      %563 = vmatpush1.msra.mxu0 0.0
      %564 = vmatprep.subr.mxu0 0.0
      %565 = vmatpush1.msra.mxu0 0.0
      %566 = vmatprep.subr.mxu0 %v498
      %567 = vmatpush1.msra.mxu0 %v497
      %568 = vmatprep.subr.mxu0 0.0
      %569 = vmatpush2.msra.mxu0 0.0
      %570 = vmatprep.subr.mxu0 0.0
      %571 = vmatpush2.msra.mxu0 0.0
      %572 = vmatprep.subr.mxu0 0.0
      %573 = vmatpush2.msra.mxu0 0.0
      %574 = vmatprep.subr.mxu0 0.0
      %575 = vmatpush2.msra.mxu0 0.0
      %576 = vmatprep.subr.mxu0 0.0
      %577 = vmatpush2.msra.mxu0 0.0
      %578 = vmatprep.subr.mxu0 0.0
      %579 = vmatpush2.msra.mxu0 0.0
      %580 = vmatprep.subr.mxu0 0.0
      %581 = vmatpush2.msra.mxu0 0.0
      %582 = vmatprep.subr.mxu0 0.0
      %583 = vmatpush2.msra.mxu0 0.0
      %584 = vmatprep.subr.mxu0 0.0
      %585 = vmatpush2.msra.mxu0 0.0
      %586 = vmatprep.subr.mxu0 0.0
      %587 = vmatpush2.msra.mxu0 0.0
      %588 = vmatprep.subr.mxu0 0.0
      %589 = vmatpush2.msra.mxu0 0.0
      %590 = vmatprep.subr.mxu0 0.0
      %591 = vmatpush2.msra.mxu0 0.0
      %592 = vmatprep.subr.mxu0 0.0
      %593 = vmatpush2.msra.mxu0 0.0
      %594 = vmatprep.subr.mxu0 0.0
      %595 = vmatpush2.msra.mxu0 0.0
      %596 = vmatprep.subr.mxu0 0.0
      %597 = vmatpush2.msra.mxu0 0.0
      %598 = vmatprep.subr.mxu0 0.0
      %599 = vmatpush2.msra.mxu0 0.0
      %600 = vmatprep.mubr.f32.mxu0 0.0
      %601 = vmatmul.mubr.f32.gmra.mxu0 %v510
      %v602 = vpop.f32.mrf.mxu0
      %v603 = vadd.f32 0.0, %v602
      %v604 = vpop.f32.mrf.mxu0
      %v605 = vadd.f32 0.0, %v604
      %606 = vmatprep.mubr.f32.mxu0 0.0
      %607 = vmatmul.mubr.f32.gmra.mxu0 %v513
      %v608 = vpop.f32.mrf.mxu0
      %v609 = vadd.f32 0.0, %v608
      %v610 = vpop.f32.mrf.mxu0
      %v611 = vadd.f32 0.0, %v610
      %612 = vmatprep.mubr.f32.mxu0 0.0
      %613 = vmatmul.mubr.f32.gmra.mxu0 %v516
      %v614 = vpop.f32.mrf.mxu0
      %v615 = vadd.f32 0.0, %v614
      %v616 = vpop.f32.mrf.mxu0
      %v617 = vadd.f32 0.0, %v616
      %618 = vmatprep.mubr.f32.mxu0 0.0
      %619 = vmatmul.mubr.f32.gmra.mxu0 %v519
      %v620 = vpop.f32.mrf.mxu0
      %v621 = vadd.f32 0.0, %v620
      %v622 = vpop.f32.mrf.mxu0
      %v623 = vadd.f32 0.0, %v622
      %624 = vmatprep.mubr.f32.mxu0 0.0
      %625 = vmatmul.mubr.f32.gmra.mxu0 %v522
      %v626 = vpop.f32.mrf.mxu0
      %v627 = vadd.f32 0.0, %v626
      %v628 = vpop.f32.mrf.mxu0
      %v629 = vadd.f32 0.0, %v628
      %630 = vmatprep.mubr.f32.mxu0 0.0
      %631 = vmatmul.mubr.f32.gmra.mxu0 %v525
      %v632 = vpop.f32.mrf.mxu0
      %v633 = vadd.f32 0.0, %v632
      %v634 = vpop.f32.mrf.mxu0
      %v635 = vadd.f32 0.0, %v634
      %636 = vmatprep.mubr.f32.mxu0 0.0
      %637 = vmatmul.mubr.f32.gmra.mxu0 %v528
      %v638 = vpop.f32.mrf.mxu0
      %v639 = vadd.f32 0.0, %v638
      %v640 = vpop.f32.mrf.mxu0
      %v641 = vadd.f32 0.0, %v640
      %642 = vmatprep.mubr.f32.mxu0 0.0
      %643 = vmatmul.mubr.f32.gmra.mxu0 %v531
      %v644 = vpop.f32.mrf.mxu0
      %v645 = vadd.f32 0.0, %v644
      %v646 = vpop.f32.mrf.mxu0
      %v647 = vadd.f32 0.0, %v646
      %648 = vmatprep.mubr.f32.mxu0 0.0
      %649 = vmatmul.mubr.f32.gmra.mxu0 %v534
      %v650 = vpop.f32.mrf.mxu0
      %v651 = vadd.f32 0.0, %v650
      %v652 = vpop.f32.mrf.mxu0
      %v653 = vadd.f32 0.0, %v652
      %654 = vdwg.mxu0
      %655 = vrot.lane.b32.xlu0 %v603, 17
      %v656 = vpop.permute.xlu0 %655
      %657 = vrot.lane.b32.xlu0 %v605, 17
      %v658 = vpop.permute.xlu0 %657
      %v659 = vsel %vm368, %v656, %v658
      %v660 = vsel %vm368, %v658, %v656
      %v661 = vmul.f32 %v660, %v371
      %v662 = vmul.f32 %v659, %v372
      %663 = vrot.lane.b32.xlu0 %v609, 16
      %v664 = vpop.permute.xlu0 %663
      %665 = vrot.lane.b32.xlu0 %v611, 16
      %v666 = vpop.permute.xlu0 %665
      %v667 = vsel %vm379, %v664, %v666
      %v668 = vsel %vm379, %v666, %v664
      %v669 = vmul.f32 %v668, %v383
      %v670 = vmul.f32 %v667, %v384
      %671 = vrot.lane.b32.xlu0 %v615, 15
      %v672 = vpop.permute.xlu0 %671
      %673 = vrot.lane.b32.xlu0 %v617, 15
      %v674 = vpop.permute.xlu0 %673
      %v675 = vsel %vm391, %v672, %v674
      %v676 = vsel %vm391, %v674, %v672
      %v677 = vmul.f32 %v676, %v395
      %v678 = vmul.f32 %v675, %v396
      %679 = vrot.lane.b32.xlu0 %v621, 1
      %v680 = vpop.permute.xlu0 %679
      %681 = vrot.lane.b32.xlu0 %v623, 1
      %v682 = vpop.permute.xlu0 %681
      %v683 = vsel %vm403, %v680, %v682
      %v684 = vsel %vm403, %v682, %v680
      %v685 = vmul.f32 %v684, %v407
      %v686 = vmul.f32 %v683, %v408
      %687 = vrot.lane.b32.xlu0 %v633, 127
      %v688 = vpop.permute.xlu0 %687
      %689 = vrot.lane.b32.xlu0 %v635, 127
      %v690 = vpop.permute.xlu0 %689
      %v691 = vsel %vm415, %v688, %v690
      %v692 = vsel %vm415, %v690, %v688
      %v693 = vmul.f32 %v691, %v419
      %v694 = vmul.f32 %v692, %v420
      %695 = vrot.lane.b32.xlu0 %v639, 113
      %v696 = vpop.permute.xlu0 %695
      %697 = vrot.lane.b32.xlu0 %v641, 113
      %v698 = vpop.permute.xlu0 %697
      %v699 = vsel %vm427, %v696, %v698
      %v700 = vsel %vm427, %v698, %v696
      %v701 = vmul.f32 %v699, %v431
      %v702 = vmul.f32 %v700, %v432
      %703 = vrot.lane.b32.xlu0 %v645, 112
      %v704 = vpop.permute.xlu0 %703
      %705 = vrot.lane.b32.xlu0 %v647, 112
      %v706 = vpop.permute.xlu0 %705
      %v707 = vsel %vm439, %v704, %v706
      %v708 = vsel %vm439, %v706, %v704
      %v709 = vmul.f32 %v707, %v443
      %v710 = vmul.f32 %v708, %v444
      %711 = vrot.lane.b32.xlu0 %v651, 111
      %v712 = vpop.permute.xlu0 %711
      %713 = vrot.lane.b32.xlu0 %v653, 111
      %v714 = vpop.permute.xlu0 %713
      %v715 = vsel %vm451, %v712, %v714
      %v716 = vsel %vm451, %v714, %v712
      %v717 = vmul.f32 %v715, %v455
      %v718 = vmul.f32 %v716, %v456
      %v719 = vadd.f32 %v661, %v669
      %v720 = vadd.f32 %v662, %v670
      %v721 = vadd.f32 %v677, %v685
      %v722 = vadd.f32 %v678, %v686
      %v723 = vadd.f32 %v627, %v693
      %v724 = vadd.f32 %v629, %v694
      %v725 = vadd.f32 %v701, %v709
      %v726 = vadd.f32 %v702, %v710
      %v727 = vadd.f32 %v719, %v721
      %v728 = vadd.f32 %v720, %v722
      %v729 = vadd.f32 %v723, %v725
      %v730 = vadd.f32 %v724, %v726
      %v731 = vadd.f32 %v727, %v729
      %v732 = vadd.f32 %v728, %v730
      %v733 = vadd.f32 %v731, %v717
      %v734 = vadd.f32 %v732, %v718
      %v735 = vadd.f32 %v733, %v734
      %736 = vadd.xlane.f32.xlu0 %v735
      %v737 = vpop.xlane.xlu0 %736
      %v738 = vmul.f32 %v737, %v478
      %v739 = vmul.f32 %v733, %v733
      %v740 = vmul.f32 %v734, %v734
      %v741 = vadd.f32 %v739, %v740
      %742 = vadd.xlane.f32.xlu0 %v741
      %v743 = vpop.xlane.xlu0 %742
      %v744 = vmul.f32 %v743, %v478
      %v745 = vmul.f32 %v738, %v738
      %v746 = vsub.f32 %v744, %v745
      %v747 = vmax.f32 %v746, 0.0
      %v748 = vsub.f32 %v733, %v738
      %v749 = vsub.f32 %v734, %v738
      %v750 = vadd.f32 %v747, 1e-05
      %v751 = vrsqrt.pop %v750
      %v752 = vmul.f32 %v748, %v751
      %v753 = vmul.f32 %v749, %v751
      %v754 = vmul.f32 %v752, 0.2
      %v755 = vmul.f32 %v753, 0.2
      %v756 = vmax.f32 %v752, %v754
      %v757 = vmax.f32 %v753, %v755
      %758 = vst [vmem:[%s197] sm:$0xff] %v756
      %759 = vst [vmem:[%s197 + $0x8] sm:$0xff] %v757
      %p760 = scmp.lt.s32.totalorder %s15, 1
      %s761 = scalar_select %p760, %s15, 1
      %s762 = smul.addr %s761, 2
      %s763 = smul.addr %s762, 8
      %s764 = scalar_lea.vmem %s4, %s763
      // Predicated region
      $region37: #{double_conv_block.1} parent=35 // pred_check
        %p765 = pneg %p122
      $region38: #{double_conv_block.1} parent=35 // pred_check_branch
        %767 = sbr.rel (%p765) target = $region40
      $region39: #{double_conv_block.1} parent=35 // pred_region
        _
      $region40: #{double_conv_block.1} parent=35 // pred_fallthru
        _
    $region36: #{double_conv_block.1} parent=5 // pred_fallthru
      _
    %p768 = scmp.le.s32.totalorder 2, %s10
    // Predicated region
    $region41: #{double_conv_block.1} parent=5 // pred_check
      %p769 = pneg %p768
    $region42: #{double_conv_block.1} parent=5 // pred_check_branch
      %771 = sbr.rel (%p769) target = $region44
    $region43: #{double_conv_block.1} parent=5 // pred_region
      %s772 = ssub.s32 %s10, 2
      // Predicated region
      $region45: #{double_conv_block.1} parent=43 // pred_check
        %p773 = pneg %p128
      $region46: #{double_conv_block.1} parent=43 // pred_check_branch
        %775 = sbr.rel (%p773) target = $region48
      $region47: #{double_conv_block.1} parent=43 // pred_region
        %p776 = scmp.lt.s32.totalorder %s16, 1
        %s777 = scalar_select %p776, %s16, 1
        %s778 = smul.addr %s777, 2
        %s779 = smul.addr %s778, 8
        %s780 = scalar_lea.vmem %s4, %s779
      $region48: #{double_conv_block.1} parent=43 // pred_fallthru
        _
    $region44: #{double_conv_block.1} parent=5 // pred_fallthru
      _
  $region6: #{double_conv_block.1} parent=0 // loop_footer
    %s14 = sadd.s32 1, %s10
  $region7: #{double_conv_block.1} parent=0 // loop_footer_branch
    %9 = sbr.rel target = $region3
  $region8: #{double_conv_block.1} parent=0 // loop_exit
    _

</llo_original>
